<compile_context>
chip_gen: v6e
topology: v6e:2x2x1
jax: 0.10.0
libtpu: 0.0.40
codegen_flags: <defaults>
</compile_context>

<pallas_src>
import jax
import jax.numpy as jnp
from jax.experimental import pallas as pl
from jax.experimental.pallas import tpu as pltpu


def _round_up(x: int, m: int) -> int:
    return ((x + m - 1) // m) * m


def _make_output_kernel(eps: float):
    def kernel(x_ref, res_ref, w_ref, b_ref, g_ref, beta_ref, o_ref, acc_ref):
        # x_ref:    [TM, TK]  hidden_states tile (K-slice of intermediate dim)
        # res_ref:  [TM, H]   residual (input_tensor) tile
        # w_ref:    [H,  TK]  dense weight K-slice (torch [H, I] layout)
        # b_ref:    [1,  H]   dense bias
        # g_ref:    [1,  H]   LayerNorm gamma
        # beta_ref: [1,  H]   LayerNorm beta
        # acc_ref:  [TM, H]   f32 accumulator scratch (resident across K)
        k = pl.program_id(1)

        @pl.when(k == 0)
        def _():
            acc_ref[...] = jnp.zeros_like(acc_ref)

        # Partial matmul over this K tile: x[TM,TK] . w[H,TK]^T -> [TM,H].
        # Operands are fed in their native dtype; accumulate in f32 on the MXU.
        acc_ref[...] += jax.lax.dot_general(
            x_ref[...], w_ref[...],
            dimension_numbers=(((1,), (1,)), ((), ())),
            preferred_element_type=jnp.float32,
        )

        @pl.when(k == pl.num_programs(1) - 1)
        def _():
            # Epilogue: bias + residual + LayerNorm, all in f32.
            b = b_ref[...].astype(jnp.float32)
            g = g_ref[...].astype(jnp.float32)
            beta = beta_ref[...].astype(jnp.float32)

            # Dropout: identity at inference time.
            # TODO(synk): training-mode dropout (pltpu.prng_random_bits mask) not implemented.
            z = acc_ref[...] + b + res_ref[...].astype(jnp.float32)

            mean = jnp.mean(z, axis=-1, keepdims=True)
            zc = z - mean
            var = jnp.mean(zc * zc, axis=-1, keepdims=True)
            inv = jax.lax.rsqrt(var + eps)          # EUP; effectively free
            # Fold gamma into inv_std: one combined scale pass.
            o_ref[...] = (zc * (g * inv) + beta).astype(o_ref.dtype)

    return kernel


def cpmbee_output(hidden_states, input_tensor, dense_w, dense_b, ln_g, ln_b,
                  *, eps: float = 1e-6, row_tile: int = 256, k_tile: int = 512,
                  vmem_limit_bytes: int = 48 * 1024 * 1024):
    """hidden_states: [..., I], input_tensor: [..., H], dense_w: [H, I] (torch layout)."""
    orig_shape = input_tensor.shape
    H, I = dense_w.shape

    x = hidden_states.reshape(-1, I)
    res = input_tensor.reshape(-1, H)
    M = x.shape[0]

    # Row tile: multiple of 8 sublanes, capped at (padded) M. Ragged M handled by padding.
    rt = min(row_tile, _round_up(M, 8))
    rt = max(8, (rt // 8) * 8)
    Mp = _round_up(M, rt)
    if Mp != M:
        x = jnp.pad(x, ((0, Mp - M), (0, 0)))
        res = jnp.pad(res, ((0, Mp - M), (0, 0)))

    # K tile: multiple of 128 lanes, capped at (padded) I. Zero-padding K adds nothing.
    kt = min(k_tile, _round_up(I, 128))
    kt = max(128, (kt // 128) * 128)
    Ip = _round_up(I, kt)
    w = dense_w                              # keep torch [H, I]; no HBM transpose
    if Ip != I:
        x = jnp.pad(x, ((0, 0), (0, Ip - I)))
        w = jnp.pad(w, ((0, 0), (0, Ip - I)))

    b2 = dense_b.reshape(1, H)
    g2 = ln_g.reshape(1, H)
    beta2 = ln_b.reshape(1, H)

    grid = (Mp // rt, Ip // kt)

    out = pl.pallas_call(
        _make_output_kernel(eps),
        out_shape=jax.ShapeDtypeStruct((Mp, H), hidden_states.dtype),
        grid_spec=pltpu.PrefetchScalarGridSpec(
            num_scalar_prefetch=0,
            grid=grid,
            in_specs=[
                pl.BlockSpec((rt, kt), lambda i, k: (i, k)),   # hidden_states tile
                pl.BlockSpec((rt, H), lambda i, k: (i, 0)),    # residual tile
                pl.BlockSpec((H, kt), lambda i, k: (0, k)),    # weight K-slice ([H, I])
                pl.BlockSpec((1, H), lambda i, k: (0, 0)),     # bias
                pl.BlockSpec((1, H), lambda i, k: (0, 0)),     # gamma
                pl.BlockSpec((1, H), lambda i, k: (0, 0)),     # beta
            ],
            out_specs=pl.BlockSpec((rt, H), lambda i, k: (i, 0)),
            scratch_shapes=[pltpu.VMEM((rt, H), jnp.float32)],
        ),
        compiler_params=pltpu.CompilerParams(
            dimension_semantics=("parallel", "arbitrary"),
            vmem_limit_bytes=vmem_limit_bytes,
        ),
    )(x, res, w, b2, g2, beta2)

    if Mp != M:
        out = out[:M]
    return out.reshape(orig_shape)


def _reference(hidden_states, input_tensor, dense_w, dense_b, ln_g, ln_b, eps=1e-6):
    y = hidden_states.astype(jnp.float32) @ dense_w.T.astype(jnp.float32) + dense_b
    z = y + input_tensor.astype(jnp.float32)
    mean = jnp.mean(z, axis=-1, keepdims=True)
    var = jnp.mean((z - mean) ** 2, axis=-1, keepdims=True)
    return ((z - mean) * jax.lax.rsqrt(var + eps)) * ln_g + ln_b


if __name__ == "__main__":
    # Small config: batch=2, seq=8, hidden_size=32, intermediate_size=128
    batch, seq = 2, 8
    hidden_size, intermediate_size = 32, 128
    eps = 1e-6

    key = jax.random.PRNGKey(0)
    k1, k2, k3, k4 = jax.random.split(key, 4)

    hidden_states = jax.random.normal(k1, (batch, seq, intermediate_size), dtype=jnp.float32)
    input_tensor = jax.random.normal(k2, (batch, seq, hidden_size), dtype=jnp.float32)

    # Deterministic parameter init (synthetic, not a checkpoint).
    dense_w = jax.random.normal(k3, (hidden_size, intermediate_size), dtype=jnp.float32) * 0.02
    dense_b = jax.random.normal(k4, (hidden_size,), dtype=jnp.float32) * 0.02
    ln_g = jnp.ones((hidden_size,), dtype=jnp.float32)
    ln_b = jnp.zeros((hidden_size,), dtype=jnp.float32)

    out = cpmbee_output(hidden_states, input_tensor, dense_w, dense_b, ln_g, ln_b, eps=eps)
    out = jax.block_until_ready(out)

    ref = _reference(hidden_states, input_tensor, dense_w, dense_b, ln_g, ln_b, eps=eps)
    assert out.shape == (batch, seq, hidden_size)
    assert jnp.allclose(out, ref, atol=1e-4, rtol=1e-4), "mismatch vs reference"

    print("KERNEL_OK")
</pallas_src>

<mosaic_0001>
module attributes {stable_mosaic.version = 11 : i64} {
  func.func @kernel(%arg0: i32, %arg1: i32, %arg2: memref<16x128xf32, #tpu.memory_space<vmem>>, %arg3: memref<16x32xf32, #tpu.memory_space<vmem>>, %arg4: memref<32x128xf32, #tpu.memory_space<vmem>>, %arg5: memref<1x32xf32, #tpu.memory_space<vmem>>, %arg6: memref<1x32xf32, #tpu.memory_space<vmem>>, %arg7: memref<1x32xf32, #tpu.memory_space<vmem>>, %arg8: memref<16x32xf32, #tpu.memory_space<vmem>>, %arg9: memref<16x32xf32, #tpu.memory_space<vmem>>) attributes {dimension_semantics = [#tpu.dimension_semantics<parallel>, #tpu.dimension_semantics<arbitrary>], iteration_bounds = array<i64: 1, 1>, scalar_prefetch = 0 : i64, scratch_operands = 1 : i64, tpu.core_type = #tpu.core_type<tc>, window_params = [{transform_indices = @transform_0, window_bounds = array<i64: 16, 128>}, {transform_indices = @transform_1, window_bounds = array<i64: 16, 32>}, {transform_indices = @transform_2, window_bounds = array<i64: 32, 128>}, {pipeline_mode = #tpu.pipeline_mode<synchronous>, transform_indices = @transform_3, window_bounds = array<i64: 1, 32>}, {pipeline_mode = #tpu.pipeline_mode<synchronous>, transform_indices = @transform_4, window_bounds = array<i64: 1, 32>}, {pipeline_mode = #tpu.pipeline_mode<synchronous>, transform_indices = @transform_5, window_bounds = array<i64: 1, 32>}, {transform_indices = @transform_6, window_bounds = array<i64: 16, 32>}]} {
    %c0_i32 = arith.constant 0 : i32
    %0 = arith.cmpi eq, %arg1, %c0_i32 : i32
    %1 = arith.extui %0 : i1 to i32
    %c0_i32_0 = arith.constant 0 : i32
    %2 = arith.cmpi ne, %1, %c0_i32_0 : i32
    scf.if %2 {
      %cst_10 = arith.constant 0.000000e+00 : f32
      %12 = vector.broadcast %cst_10 : f32 to vector<16x32xf32>
      %c0_11 = arith.constant 0 : index
      %c0_12 = arith.constant 0 : index
      %13 = vector.load %arg9[%c0_11, %c0_12] : memref<16x32xf32, #tpu.memory_space<vmem>>, vector<16x32xf32>
      tpu.vector_store %arg9[%c0_11, %c0_12], %12 {strides = array<i32>} : memref<16x32xf32, #tpu.memory_space<vmem>>, vector<16x32xf32>,
    } else {
    }
    %c0 = arith.constant 0 : index
    %c0_1 = arith.constant 0 : index
    %3 = vector.load %arg9[%c0, %c0_1] : memref<16x32xf32, #tpu.memory_space<vmem>>, vector<16x32xf32>
    %c0_2 = arith.constant 0 : index
    %c0_3 = arith.constant 0 : index
    %4 = vector.load %arg2[%c0_2, %c0_3] : memref<16x128xf32, #tpu.memory_space<vmem>>, vector<16x128xf32>
    %c0_4 = arith.constant 0 : index
    %c0_5 = arith.constant 0 : index
    %5 = vector.load %arg4[%c0_4, %c0_5] : memref<32x128xf32, #tpu.memory_space<vmem>>, vector<32x128xf32>
    %cst = arith.constant dense<0.000000e+00> : vector<16x32xf32>
    %6 = tpu.matmul %4, %5, %cst {dimension_numbers = #tpu.dot_dimension_numbers<[1], [1], [0], [0], [0, 0, 1, 0], [], []>} : vector<16x128xf32>, vector<32x128xf32>, vector<16x32xf32> -> vector<16x32xf32>
    %7 = arith.addf %3, %6 : vector<16x32xf32>
    %c0_6 = arith.constant 0 : index
    %c0_7 = arith.constant 0 : index
    %8 = vector.load %arg9[%c0_6, %c0_7] : memref<16x32xf32, #tpu.memory_space<vmem>>, vector<16x32xf32>
    tpu.vector_store %arg9[%c0_6, %c0_7], %7 {strides = array<i32>} : memref<16x32xf32, #tpu.memory_space<vmem>>, vector<16x32xf32>,
    %c0_i32_8 = arith.constant 0 : i32
    %9 = arith.cmpi eq, %arg1, %c0_i32_8 : i32
    %10 = arith.extui %9 : i1 to i32
    %c0_i32_9 = arith.constant 0 : i32
    %11 = arith.cmpi ne, %10, %c0_i32_9 : i32
    scf.if %11 {
      %c0_10 = arith.constant 0 : index
      %c0_11 = arith.constant 0 : index
      %12 = vector.load %arg5[%c0_10, %c0_11] : memref<1x32xf32, #tpu.memory_space<vmem>>, vector<1x32xf32>
      %c0_12 = arith.constant 0 : index
      %c0_13 = arith.constant 0 : index
      %13 = vector.load %arg6[%c0_12, %c0_13] : memref<1x32xf32, #tpu.memory_space<vmem>>, vector<1x32xf32>
      %c0_14 = arith.constant 0 : index
      %c0_15 = arith.constant 0 : index
      %14 = vector.load %arg7[%c0_14, %c0_15] : memref<1x32xf32, #tpu.memory_space<vmem>>, vector<1x32xf32>
      %c0_16 = arith.constant 0 : index
      %c0_17 = arith.constant 0 : index
      %15 = vector.load %arg9[%c0_16, %c0_17] : memref<16x32xf32, #tpu.memory_space<vmem>>, vector<16x32xf32>
      %16 = vector.broadcast %12 : vector<1x32xf32> to vector<16x32xf32>
      %17 = arith.addf %15, %16 : vector<16x32xf32>
      %c0_18 = arith.constant 0 : index
      %c0_19 = arith.constant 0 : index
      %18 = vector.load %arg3[%c0_18, %c0_19] : memref<16x32xf32, #tpu.memory_space<vmem>>, vector<16x32xf32>
      %19 = arith.addf %17, %18 : vector<16x32xf32>
      %cst_20 = arith.constant dense<0.000000e+00> : vector<16xf32>
      %20 = vector.multi_reduction <add>, %19, %cst_20 [1] : vector<16x32xf32> to vector<16xf32>
      %21 = vector.shape_cast %20 : vector<16xf32> to vector<16x1xf32>
      %cst_21 = arith.constant 3.200000e+01 : f32
      %22 = vector.broadcast %cst_21 : f32 to vector<16x1xf32>
      %23 = arith.divf %21, %22 : vector<16x1xf32>
      %24 = vector.broadcast %23 : vector<16x1xf32> to vector<16x32xf32>
      %25 = arith.subf %19, %24 : vector<16x32xf32>
      %26 = arith.mulf %25, %25 : vector<16x32xf32>
      %cst_22 = arith.constant dense<0.000000e+00> : vector<16xf32>
      %27 = vector.multi_reduction <add>, %26, %cst_22 [1] : vector<16x32xf32> to vector<16xf32>
      %28 = vector.shape_cast %27 : vector<16xf32> to vector<16x1xf32>
      %cst_23 = arith.constant 3.200000e+01 : f32
      %29 = vector.broadcast %cst_23 : f32 to vector<16x1xf32>
      %30 = arith.divf %28, %29 : vector<16x1xf32>
      %cst_24 = arith.constant 9.99999997E-7 : f32
      %31 = vector.broadcast %cst_24 : f32 to vector<16x1xf32>
      %32 = arith.addf %30, %31 : vector<16x1xf32>
      %33 = math.rsqrt %32 : vector<16x1xf32>
      %34 = vector.broadcast %13 : vector<1x32xf32> to vector<16x32xf32>
      %35 = vector.broadcast %33 : vector<16x1xf32> to vector<16x32xf32>
      %36 = arith.mulf %34, %35 : vector<16x32xf32>
      %37 = arith.mulf %25, %36 : vector<16x32xf32>
      %38 = vector.broadcast %14 : vector<1x32xf32> to vector<16x32xf32>
      %39 = arith.addf %37, %38 : vector<16x32xf32>
      %c0_25 = arith.constant 0 : index
      %c0_26 = arith.constant 0 : index
      %40 = vector.load %arg8[%c0_25, %c0_26] : memref<16x32xf32, #tpu.memory_space<vmem>>, vector<16x32xf32>
      tpu.vector_store %arg8[%c0_25, %c0_26], %39 {strides = array<i32>} : memref<16x32xf32, #tpu.memory_space<vmem>>, vector<16x32xf32>,
    } else {
    }
    return
  }
  func.func @transform_0(%arg0: i32, %arg1: i32) -> (i32, i32) {
    %c0_i32 = arith.constant 0 : i32
    return %arg0, %arg1 : i32, i32
  }
  func.func @transform_1(%arg0: i32, %arg1: i32) -> (i32, i32) {
    %c0_i32 = arith.constant 0 : i32
    %c0_i32_0 = arith.constant 0 : i32
    return %arg0, %c0_i32 : i32, i32
  }
  func.func @transform_2(%arg0: i32, %arg1: i32) -> (i32, i32) {
    %c0_i32 = arith.constant 0 : i32
    %c0_i32_0 = arith.constant 0 : i32
    return %c0_i32, %arg1 : i32, i32
  }
  func.func @transform_3(%arg0: i32, %arg1: i32) -> (i32, i32) {
    %c0_i32 = arith.constant 0 : i32
    %c0_i32_0 = arith.constant 0 : i32
    %c0_i32_1 = arith.constant 0 : i32
    return %c0_i32, %c0_i32_0 : i32, i32
  }
  func.func @transform_4(%arg0: i32, %arg1: i32) -> (i32, i32) {
    %c0_i32 = arith.constant 0 : i32
    %c0_i32_0 = arith.constant 0 : i32
    %c0_i32_1 = arith.constant 0 : i32
    return %c0_i32, %c0_i32_0 : i32, i32
  }
  func.func @transform_5(%arg0: i32, %arg1: i32) -> (i32, i32) {
    %c0_i32 = arith.constant 0 : i32
    %c0_i32_0 = arith.constant 0 : i32
    %c0_i32_1 = arith.constant 0 : i32
    return %c0_i32, %c0_i32_0 : i32, i32
  }
  func.func @transform_6(%arg0: i32, %arg1: i32) -> (i32, i32) {
    %c0_i32 = arith.constant 0 : i32
    %c0_i32_0 = arith.constant 0 : i32
    return %arg0, %c0_i32 : i32, i32
  }
}

</mosaic_0001>

<llo_original>
// kernel: tpu_custom_call.1
$region0: #{tpu_custom_call.1}
  #allocation0 [shape = 'u32[]', space=smem, size = 0x4, offset = 0x4, fixed_abs, tag = 'smem constant byte address 0x4 - core index']
  #allocation1 [shape = 'u32[144,128]{1,0:T(1,128)}', space=vmem, size = 0x12000, scoped, tag = 'internal scratch']
  #allocation2 [shape = 'f32[16,32]{1,0:T(8,128)}', space=vmem, size = 0x2000, scoped, tag = 'scratch operand']
  %s0 = inlined_call_operand.hbm [shape: f32[16,128], index: 0, kind: input, shape index: {}]
  %s1 = inlined_call_operand.hbm [shape: f32[16,32], index: 1, kind: input, shape index: {}]
  %s2 = inlined_call_operand.hbm [shape: f32[32,128], index: 2, kind: input, shape index: {}]
  %s3 = inlined_call_operand.vmem [shape: f32[1,32], index: 3, kind: input, shape index: {}]
  %s4 = inlined_call_operand.vmem [shape: f32[1,32], index: 4, kind: input, shape index: {}]
  %s5 = inlined_call_operand.vmem [shape: f32[1,32], index: 5, kind: input, shape index: {}]
  %s6 = inlined_call_operand.hbm [shape: f32[16,32], index: 6, kind: output, shape index: {}]
  %s7 = sld [smem:[#allocation0]]
  $region54: #{tpu_custom_call.1} parent=0
    _
  %s9 = ssub.s32 1, %s7
  %s10 = scalar_select 0, %s9, %s7
  $region1: #{tpu_custom_call.1} parent=0
    #allocation3 [shape = 'u8[8192]{0}', space=vmem, size = 0x2000, scoped, tag = 'input window, operand 0, single buffered']
    #allocation4 [shape = 's32[1]{0}', space=sflag, size = 0x4, scoped, tag = 'scoped memory for tpu_custom_call.1']
    #allocation5 [shape = 's32[1]{0}', space=sflag, size = 0x4, scoped, tag = 'scoped memory for tpu_custom_call.1']
    #allocation6 [shape = 'u8[8192]{0}', space=vmem, size = 0x2000, scoped, tag = 'input window, operand 1, single buffered']
    #allocation7 [shape = 's32[1]{0}', space=sflag, size = 0x4, scoped, tag = 'scoped memory for tpu_custom_call.1']
    #allocation8 [shape = 'u8[16384]{0}', space=vmem, size = 0x4000, scoped, tag = 'input window, operand 2, single buffered']
    #allocation9 [shape = 'u8[8192]{0}', space=vmem, size = 0x2000, scoped, tag = 'output window, operand 0, single buffered']
    %11 = vsyncpa [#allocation4], 0
    %12 = vsyncpa [#allocation7], 0
    %13 = vsyncpa [#allocation5], 0
    // Predicated region
    $region2: #{tpu_custom_call.1} parent=1 // pred_check
      _
    $region3: #{tpu_custom_call.1} parent=1 // pred_check_branch
      %15 = sbr.rel (0) target = $region5
    $region4: #{tpu_custom_call.1} parent=1 // pred_region
      %s17 = ssub.s32 256, 256
      %18 = vsyncadd [#allocation4], %s17
      %s19 = sshll.u32 [#allocation3], 4
      %s20 = int_to_ptr.vmem [resolvable:$true] %s19
      %25 = dma.hbm_to_vmem [thread:$0]  %s0, 256, %s20, [#allocation4], 128, 128, 8
    $region5: #{tpu_custom_call.1} parent=1 // pred_fallthru
      _
    // Predicated region
    $region6: #{tpu_custom_call.1} parent=1 // pred_check
      _
    $region7: #{tpu_custom_call.1} parent=1 // pred_check_branch
      %27 = sbr.rel (0) target = $region9
    $region8: #{tpu_custom_call.1} parent=1 // pred_region
      %s29 = ssub.s32 256, 256
      %30 = vsyncadd [#allocation7], %s29
      %s31 = sshll.u32 [#allocation6], 4
      %s32 = int_to_ptr.vmem [resolvable:$true] %s31
      %37 = dma.hbm_to_vmem [thread:$0]  %s1, 256, %s32, [#allocation7], 128, 128, 8
    $region9: #{tpu_custom_call.1} parent=1 // pred_fallthru
      _
    // Predicated region
    $region10: #{tpu_custom_call.1} parent=1 // pred_check
      _
    $region11: #{tpu_custom_call.1} parent=1 // pred_check_branch
      %39 = sbr.rel (0) target = $region13
    $region12: #{tpu_custom_call.1} parent=1 // pred_region
      %s41 = ssub.s32 512, 512
      %42 = vsyncadd [#allocation7], %s41
      %s43 = sshll.u32 [#allocation8], 4
      %s44 = int_to_ptr.vmem [resolvable:$true] %s43
      %49 = dma.hbm_to_vmem [thread:$0]  %s2, 512, %s44, [#allocation7], 128, 128, 8
    $region13: #{tpu_custom_call.1} parent=1 // pred_fallthru
      _
    // Predicated region
    $region14: #{tpu_custom_call.1} parent=1 // pred_check
      _
    $region15: #{tpu_custom_call.1} parent=1 // pred_check_branch
      %51 = sbr.rel (0) target = $region17
    $region16: #{tpu_custom_call.1} parent=1 // pred_region
      _
    $region17: #{tpu_custom_call.1} parent=1 // pred_fallthru
      _
    // Predicated region
    $region18: #{tpu_custom_call.1} parent=1 // pred_check
      _
    $region19: #{tpu_custom_call.1} parent=1 // pred_check_branch
      %53 = sbr.rel (0) target = $region21
    $region20: #{tpu_custom_call.1} parent=1 // pred_region
      _
    $region21: #{tpu_custom_call.1} parent=1 // pred_fallthru
      _
    // Predicated region
    $region22: #{tpu_custom_call.1} parent=1 // pred_check
      _
    $region23: #{tpu_custom_call.1} parent=1 // pred_check_branch
      %55 = sbr.rel (0) target = $region25
    $region24: #{tpu_custom_call.1} parent=1 // pred_region
      _
    $region25: #{tpu_custom_call.1} parent=1 // pred_fallthru
      _
    // Predicated region
    $region26: #{tpu_custom_call.1} parent=1 // pred_check
      _
    $region27: #{tpu_custom_call.1} parent=1 // pred_check_branch
      %57 = sbr.rel (0) target = $region29
    $region28: #{tpu_custom_call.1} parent=1 // pred_region
      %58 = dma.done [#allocation4], 256
    $region29: #{tpu_custom_call.1} parent=1 // pred_fallthru
      _
    // Predicated region
    $region30: #{tpu_custom_call.1} parent=1 // pred_check
      _
    $region31: #{tpu_custom_call.1} parent=1 // pred_check_branch
      %60 = sbr.rel (0) target = $region33
    $region32: #{tpu_custom_call.1} parent=1 // pred_region
      %61 = dma.done [#allocation7], 256
    $region33: #{tpu_custom_call.1} parent=1 // pred_fallthru
      _
    // Predicated region
    $region34: #{tpu_custom_call.1} parent=1 // pred_check
      _
    $region35: #{tpu_custom_call.1} parent=1 // pred_check_branch
      %63 = sbr.rel (0) target = $region37
    $region36: #{tpu_custom_call.1} parent=1 // pred_region
      %64 = dma.done [#allocation7], 512
    $region37: #{tpu_custom_call.1} parent=1 // pred_fallthru
      _
    %p65 = scmp.eq.s32.totalorder 0, 0
    // Predicated region
    $region38: #{tpu_custom_call.1} parent=1 // pred_check
      %p66 = pneg %p65
    $region39: #{tpu_custom_call.1} parent=1 // pred_check_branch
      %68 = sbr.rel (%p66) target = $region41
    $region40: #{tpu_custom_call.1} parent=1 // pred_region
      %vm69 = vcmask 261120
      %70 = vst.msk [vmem:[#allocation2] sm:$0xff] %vm69, 0.0
      %71 = vst.msk [vmem:[#allocation2 + $0x8] sm:$0xff] %vm69, 0.0
    $region41: #{tpu_custom_call.1} parent=1 // pred_fallthru
      _
    %v72 = vld [vmem:[#allocation2] sm:$0xff]
    %v73 = vld [vmem:[#allocation2 + $0x8] sm:$0xff]
    %v74 = vld [vmem:[#allocation3] sm:$0xff]
    %v75 = vld [vmem:[#allocation3 + $0x8] sm:$0xff]
    %v76 = vld [vmem:[#allocation8] sm:$0xff]
    %v77 = vld [vmem:[#allocation8 + $0x8] sm:$0xff]
    %v78 = vld [vmem:[#allocation8 + $0x10] sm:$0xff]
    %v79 = vld [vmem:[#allocation8 + $0x18] sm:$0xff]
    %80 = vmatprep.subr.mxu0 0.0
    %81 = vmatpush1.xpose.msra.mxu0 0.0
    %82 = vmatprep.subr.mxu0 0.0
    %83 = vmatpush1.xpose.msra.mxu0 0.0
    %84 = vmatprep.subr.mxu0 0.0
    %85 = vmatpush1.xpose.msra.mxu0 0.0
    %86 = vmatprep.subr.mxu0 0.0
    %87 = vmatpush1.xpose.msra.mxu0 0.0
    %88 = vmatprep.subr.mxu0 0.0
    %89 = vmatpush1.xpose.msra.mxu0 0.0
    %90 = vmatprep.subr.mxu0 0.0
    %91 = vmatpush1.xpose.msra.mxu0 0.0
    %92 = vmatprep.subr.mxu0 0.0
    %93 = vmatpush1.xpose.msra.mxu0 0.0
    %94 = vmatprep.subr.mxu0 0.0
    %95 = vmatpush1.xpose.msra.mxu0 0.0
    %96 = vmatprep.subr.mxu0 0.0
    %97 = vmatpush1.xpose.msra.mxu0 0.0
    %98 = vmatprep.subr.mxu0 0.0
    %99 = vmatpush1.xpose.msra.mxu0 0.0
    %100 = vmatprep.subr.mxu0 0.0
    %101 = vmatpush1.xpose.msra.mxu0 0.0
    %102 = vmatprep.subr.mxu0 0.0
    %103 = vmatpush1.xpose.msra.mxu0 0.0
    %104 = vmatprep.subr.mxu0 0.0
    %105 = vmatpush1.xpose.msra.mxu0 %v79
    %106 = vmatprep.subr.mxu0 0.0
    %107 = vmatpush1.xpose.msra.mxu0 %v78
    %108 = vmatprep.subr.mxu0 0.0
    %109 = vmatpush1.xpose.msra.mxu0 %v77
    %110 = vmatprep.subr.mxu0 0.0
    %111 = vmatpush1.xpose.msra.mxu0 %v76
    %112 = vmatprep.subr.mxu0 0.0
    %113 = vmatpush2.xpose.msra.mxu0 0.0
    %114 = vmatprep.subr.mxu0 0.0
    %115 = vmatpush2.xpose.msra.mxu0 0.0
    %116 = vmatprep.subr.mxu0 0.0
    %117 = vmatpush2.xpose.msra.mxu0 0.0
    %118 = vmatprep.subr.mxu0 0.0
    %119 = vmatpush2.xpose.msra.mxu0 0.0
    %120 = vmatprep.subr.mxu0 0.0
    %121 = vmatpush2.xpose.msra.mxu0 0.0
    %122 = vmatprep.subr.mxu0 0.0
    %123 = vmatpush2.xpose.msra.mxu0 0.0
    %124 = vmatprep.subr.mxu0 0.0
    %125 = vmatpush2.xpose.msra.mxu0 0.0
    %126 = vmatprep.subr.mxu0 0.0
    %127 = vmatpush2.xpose.msra.mxu0 0.0
    %128 = vmatprep.subr.mxu0 0.0
    %129 = vmatpush2.xpose.msra.mxu0 0.0
    %130 = vmatprep.subr.mxu0 0.0
    %131 = vmatpush2.xpose.msra.mxu0 0.0
    %132 = vmatprep.subr.mxu0 0.0
    %133 = vmatpush2.xpose.msra.mxu0 0.0
    %134 = vmatprep.subr.mxu0 0.0
    %135 = vmatpush2.xpose.msra.mxu0 0.0
    %136 = vmatprep.subr.mxu0 0.0
    %137 = vmatpush2.xpose.msra.mxu0 0.0
    %138 = vmatprep.subr.mxu0 0.0
    %139 = vmatpush2.xpose.msra.mxu0 0.0
    %140 = vmatprep.subr.mxu0 0.0
    %141 = vmatpush2.xpose.msra.mxu0 0.0
    %142 = vmatprep.subr.mxu0 0.0
    %143 = vmatpush2.xpose.msra.mxu0 0.0
    %144 = vmatprep.mubr.f32.mxu0 0.0
    %145 = vmatmul.mubr.f32.gmra.mxu0 %v74
    %v146 = vpop.f32.mrf.mxu0
    %v147 = vadd.f32 0.0, %v146
    %v148 = vpop.f32.mrf.mxu0
    %149 = vmatprep.mubr.f32.mxu0 0.0
    %150 = vmatmul.mubr.f32.gmra.mxu0 %v75
    %v151 = vpop.f32.mrf.mxu0
    %v152 = vadd.f32 0.0, %v151
    %v153 = vpop.f32.mrf.mxu0
    %154 = vdwg.mxu0
    %v155 = vadd.f32 %v72, %v147
    %v156 = vadd.f32 %v73, %v152
    %vm157 = vcmask 261120
    %158 = vst.msk [vmem:[#allocation2] sm:$0xff] %vm157, %v155
    %159 = vst.msk [vmem:[#allocation2 + $0x8] sm:$0xff] %vm157, %v156
    // Predicated region
    $region42: #{tpu_custom_call.1} parent=1 // pred_check
      %p160 = pneg %p65
    $region43: #{tpu_custom_call.1} parent=1 // pred_check_branch
      %162 = sbr.rel (%p160) target = $region45
    $region44: #{tpu_custom_call.1} parent=1 // pred_region
      %v163 = vld [vmem:[%s3] sm:$0x1]
      %v164 = vld [vmem:[%s4] sm:$0x1]
      %v165 = vld [vmem:[%s5] sm:$0x1]
      %v166 = vld [vmem:[#allocation2] sm:$0xff]
      %v167 = vld [vmem:[#allocation2 + $0x8] sm:$0xff]
      %v169 = vlaneseq
      %v170 = vshrl.u32 %v169, 7
      %v171 = vsub.s32 0, %v170
      %v172 = vrot.slane %v163, %v171
      %v174 = vadd.f32 %v166, %v172
      %v175 = vadd.f32 %v167, %v172
      %v176 = vld [vmem:[#allocation6] sm:$0xff]
      %v177 = vld [vmem:[#allocation6 + $0x8] sm:$0xff]
      %v178 = vadd.f32 %v174, %v176
      %v179 = vadd.f32 %v175, %v177
      %v180 = vsel %vm157, %v178, 0.0
      %181 = vadd.xlane.f32.xlu0 %v180
      %v182 = vpop.xlane.xlu0 %181
      %v183 = vsel %vm157, %v179, 0.0
      %184 = vadd.xlane.f32.xlu0 %v183
      %v185 = vpop.xlane.xlu0 %184
      %v186 = vrcp.pop 32.0
      %v187 = vmul.f32 %v182, %v186
      %v188 = vmul.f32 %v185, %v186
      %v189 = vsub.f32 %v178, %v187
      %v190 = vsub.f32 %v179, %v188
      %v191 = vmul.f32 %v189, %v189
      %v192 = vmul.f32 %v190, %v190
      %v193 = vsel %vm157, %v191, 0.0
      %194 = vadd.xlane.f32.xlu0 %v193
      %v195 = vpop.xlane.xlu0 %194
      %v196 = vsel %vm157, %v192, 0.0
      %197 = vadd.xlane.f32.xlu0 %v196
      %v198 = vpop.xlane.xlu0 %197
      %v199 = vmul.f32 %v195, %v186
      %v200 = vmul.f32 %v198, %v186
      %v201 = vadd.f32 %v199, 1e-06
      %v202 = vadd.f32 %v200, 1e-06
      %v203 = vrsqrt.pop %v201
      %v204 = vrsqrt.pop %v202
      %v206 = vlaneseq
      %v207 = vshrl.u32 %v206, 7
      %v208 = vsub.s32 0, %v207
      %v209 = vrot.slane %v164, %v208
      %v211 = vmul.f32 %v209, %v203
      %v212 = vmul.f32 %v209, %v204
      %v213 = vmul.f32 %v189, %v211
      %v214 = vmul.f32 %v190, %v212
      %v216 = vlaneseq
      %v217 = vshrl.u32 %v216, 7
      %v218 = vsub.s32 0, %v217
      %v219 = vrot.slane %v165, %v218
      %v221 = vadd.f32 %v213, %v219
      %v222 = vadd.f32 %v214, %v219
      %223 = vst.msk [vmem:[#allocation9] sm:$0xff] %vm157, %v221
      %224 = vst.msk [vmem:[#allocation9 + $0x8] sm:$0xff] %vm157, %v222
    $region45: #{tpu_custom_call.1} parent=1 // pred_fallthru
      _
    // Predicated region
    $region46: #{tpu_custom_call.1} parent=1 // pred_check
      _
    $region47: #{tpu_custom_call.1} parent=1 // pred_check_branch
      %226 = sbr.rel (0) target = $region49
    $region48: #{tpu_custom_call.1} parent=1 // pred_region
      %s228 = ssub.s32 256, 256
      %229 = vsyncadd [#allocation5], %s228
      %s230 = sshll.u32 [#allocation9], 4
      %s231 = int_to_ptr.vmem [resolvable:$true] %s230
      %236 = dma.vmem_to_hbm [thread:$0]  %s231, 256, %s6, [#allocation5], 128, 128, 8
    $region49: #{tpu_custom_call.1} parent=1 // pred_fallthru
      _
    // Predicated region
    $region50: #{tpu_custom_call.1} parent=1 // pred_check
      _
    $region51: #{tpu_custom_call.1} parent=1 // pred_check_branch
      %238 = sbr.rel (0) target = $region53
    $region52: #{tpu_custom_call.1} parent=1 // pred_region
      %239 = dma.done [#allocation5], 256
    $region53: #{tpu_custom_call.1} parent=1 // pred_fallthru
      _
    %240 = vsyncpa [#allocation4], 1
    %241 = vsyncpa [#allocation7], 1
    %242 = vsyncpa [#allocation5], 1

</llo_original>
